<compile_context>
chip_gen: v5e
topology: v5e:2x2
jax: 0.10.0
libtpu: 0.0.40
codegen_flags: <defaults>
</compile_context>

<pallas_src>
import jax
import jax.numpy as jnp
import numpy as np
from jax import lax
from jax.experimental import pallas as pl
from jax.experimental.pallas import tpu as pltpu


def encoder_gru_kernel(tok_ref, emb_ref, wih_ref, whh_ref, bih_ref, bhh_ref,
                       out_ref, hid_ref):
    """Fused embedding + single-layer GRU (PyTorch gate order r, z, n; h0 = 0).

    tok_ref : [B, T]    int32  token ids
    emb_ref : [V, E]    f32    embedding table
    wih_ref : [E, 3H]   f32    W_ih^T
    whh_ref : [H, 3H]   f32    W_hh^T
    bih_ref : [1, 3H]   f32
    bhh_ref : [1, 3H]   f32
    out_ref : [B, T*H]  f32    all hidden states, lane-dense (caller reshapes to [B, T, H])
    hid_ref : [1, B, H] f32    final hidden state (PyTorch GRU hidden layout)
    """
    B, T = tok_ref.shape
    V, E = emb_ref.shape
    H = hid_ref.shape[-1]

    # ---- One-shot fused "embedding gather + input projection" (off the serial path) ----
    # proj_tbl[v] = emb[v] @ W_ih^T, so gathering a row of proj_tbl == projecting the
    # gathered embedding.  The gather itself is a one-hot matmul on the MXU.
    proj_tbl = jnp.dot(emb_ref[...], wih_ref[...],
                       preferred_element_type=jnp.float32)                   # (V, 3H)
    tok = tok_ref[...]                                                        # (B, T) int32
    iota_v = lax.broadcasted_iota(jnp.int32, (B, T, V), 2)
    onehot = (tok[:, :, None] == iota_v).astype(jnp.float32)                 # (B, T, V)
    xp_all = jnp.dot(onehot.reshape(B * T, V), proj_tbl,
                     preferred_element_type=jnp.float32) + bih_ref[...]      # (B*T, 3H)
    xp_all = xp_all.reshape(B, T, 3 * H)                                     # (B, T, 3H)

    w_hh = whh_ref[...]                                                       # (H, 3H)
    b_hh = bhh_ref[...]                                                       # (1, 3H)
    # NOTE: only b_ih is folded into the hoisted projection; b_hh (in particular b_hn)
    # must stay inside hp so that n = tanh(xp_n + r * (W_hn h + b_hn)).

    # ---- Serial GRU recurrence, fully unrolled (T is small & static) ----
    h = jnp.zeros((B, H), dtype=jnp.float32)
    hs = []
    for t in range(T):
        xp = xp_all[:, t, :]                                                  # (B, 3H)
        hp = jnp.dot(h, w_hh, preferred_element_type=jnp.float32) + b_hh      # (B, 3H)
        r = jax.nn.sigmoid(xp[:, 0:H] + hp[:, 0:H])
        z = jax.nn.sigmoid(xp[:, H:2 * H] + hp[:, H:2 * H])
        n = jnp.tanh(xp[:, 2 * H:3 * H] + r * hp[:, 2 * H:3 * H])
        h = (1.0 - z) * n + z * h
        hs.append(h)

    # ---- Single lane-dense store of all T hidden states + final hidden ----
    out_ref[...] = jnp.concatenate(hs, axis=1)                                # (B, T*H)
    hid_ref[0] = h


@jax.jit
def encoder_forward(tokens, emb_table, w_ih, w_hh, b_ih, b_hh):
    """Equivalent of Encoder.forward: returns (outputs [B,T,H], hidden [1,B,H])."""
    B, T = tokens.shape
    H = w_hh.shape[0] // 3

    # Weight prep only (tiny); no per-token activation glue.
    w_ih_t = jnp.transpose(w_ih)                  # (E, 3H)
    w_hh_t = jnp.transpose(w_hh)                  # (H, 3H)
    b_ih_2d = b_ih.reshape(1, 3 * H)
    b_hh_2d = b_hh.reshape(1, 3 * H)

    vmem = pl.BlockSpec(memory_space=pltpu.MemorySpace.VMEM)
    out_flat, hidden = pl.pallas_call(
        encoder_gru_kernel,
        out_shape=(
            jax.ShapeDtypeStruct((B, T * H), jnp.float32),
            jax.ShapeDtypeStruct((1, B, H), jnp.float32),
        ),
        in_specs=[vmem, vmem, vmem, vmem, vmem, vmem],
        out_specs=(vmem, vmem),
    )(tokens.astype(jnp.int32), emb_table, w_ih_t, w_hh_t, b_ih_2d, b_hh_2d)

    outputs = out_flat.reshape(B, T, H)           # contiguous, layout-preserving (free)
    return outputs, hidden


def gru_reference(tokens, emb_table, w_ih, w_hh, b_ih, b_hh):
    """Pure-JAX reference with PyTorch GRU semantics (gate order r, z, n; h0 = 0)."""
    embedded = jnp.take(emb_table, tokens, axis=0)            # [B, T, E]
    B, T, _ = embedded.shape
    H = w_hh.shape[0] // 3
    w_ih_t = w_ih.T
    w_hh_t = w_hh.T

    def step(h, x_t):
        xp = jnp.dot(x_t, w_ih_t, precision=lax.Precision.HIGHEST) + b_ih
        hp = jnp.dot(h, w_hh_t, precision=lax.Precision.HIGHEST) + b_hh
        r = jax.nn.sigmoid(xp[:, :H] + hp[:, :H])
        z = jax.nn.sigmoid(xp[:, H:2 * H] + hp[:, H:2 * H])
        n = jnp.tanh(xp[:, 2 * H:] + r * hp[:, 2 * H:])
        h_new = (1.0 - z) * n + z * h
        return h_new, h_new

    h0 = jnp.zeros((B, H), jnp.float32)
    h_last, outs_tm = lax.scan(step, h0, jnp.swapaxes(embedded, 0, 1))
    return jnp.swapaxes(outs_tm, 0, 1), h_last[None]


if __name__ == "__main__":
    # Small, deterministic config matching the ModelConfig.
    VOCAB, E, H = 50, 32, 32
    B, T = 2, 8

    key = jax.random.PRNGKey(0)
    k_emb, k_wih, k_whh, k_bih, k_bhh, k_tok = jax.random.split(key, 6)

    # nn.Embedding init: N(0, 1); nn.GRU init: U(-1/sqrt(H), 1/sqrt(H)).
    bound = 1.0 / np.sqrt(H)
    emb_table = jax.random.normal(k_emb, (VOCAB, E), dtype=jnp.float32)
    w_ih = jax.random.uniform(k_wih, (3 * H, E), jnp.float32, -bound, bound)
    w_hh = jax.random.uniform(k_whh, (3 * H, H), jnp.float32, -bound, bound)
    b_ih = jax.random.uniform(k_bih, (3 * H,), jnp.float32, -bound, bound)
    b_hh = jax.random.uniform(k_bhh, (3 * H,), jnp.float32, -bound, bound)

    tokens = jax.random.randint(k_tok, (B, T), 0, VOCAB, dtype=jnp.int32)

    outputs, hidden = encoder_forward(tokens, emb_table, w_ih, w_hh, b_ih, b_hh)
    outputs = jax.block_until_ready(outputs)
    hidden = jax.block_until_ready(hidden)

    assert outputs.shape == (B, T, H)
    assert hidden.shape == (1, B, H)

    ref_out, ref_hid = gru_reference(tokens, emb_table, w_ih, w_hh, b_ih, b_hh)
    np.testing.assert_allclose(np.asarray(outputs), np.asarray(ref_out), rtol=1e-3, atol=1e-3)
    np.testing.assert_allclose(np.asarray(hidden), np.asarray(ref_hid), rtol=1e-3, atol=1e-3)

    print("KERNEL_OK")
</pallas_src>

<mosaic_0001>
module attributes {stable_mosaic.version = 11 : i64} {
  func.func @encoder_gru_kernel(%arg0: memref<2x8xi32, #tpu.memory_space<vmem>>, %arg1: memref<50x32xf32, #tpu.memory_space<vmem>>, %arg2: memref<32x96xf32, #tpu.memory_space<vmem>>, %arg3: memref<32x96xf32, #tpu.memory_space<vmem>>, %arg4: memref<1x96xf32, #tpu.memory_space<vmem>>, %arg5: memref<1x96xf32, #tpu.memory_space<vmem>>, %arg6: memref<2x256xf32, #tpu.memory_space<vmem>>, %arg7: memref<1x2x32xf32, #tpu.memory_space<vmem>>) attributes {dimension_semantics = [], scalar_prefetch = 0 : i64, scratch_operands = 0 : i64, tpu.core_type = #tpu.core_type<tc>} {
    %c0 = arith.constant 0 : index
    %c0_0 = arith.constant 0 : index
    %0 = vector.load %arg1[%c0, %c0_0] : memref<50x32xf32, #tpu.memory_space<vmem>>, vector<50x32xf32>
    %c0_1 = arith.constant 0 : index
    %c0_2 = arith.constant 0 : index
    %1 = vector.load %arg2[%c0_1, %c0_2] : memref<32x96xf32, #tpu.memory_space<vmem>>, vector<32x96xf32>
    %cst = arith.constant dense<0.000000e+00> : vector<50x96xf32>
    %2 = tpu.matmul %0, %1, %cst {dimension_numbers = #tpu.dot_dimension_numbers<[1], [0], [0], [1], [0, 0, 1, 1], [], []>} : vector<50x32xf32>, vector<32x96xf32>, vector<50x96xf32> -> vector<50x96xf32>
    %c0_3 = arith.constant 0 : index
    %c0_4 = arith.constant 0 : index
    %3 = vector.load %arg0[%c0_3, %c0_4] : memref<2x8xi32, #tpu.memory_space<vmem>>, vector<2x8xi32>
    %4 = tpu.iota {dimensions = array<i32: 2>} : vector<2x8x50xi32>
    %5 = vector.shape_cast %3 : vector<2x8xi32> to vector<2x8x1xi32>
    %6 = vector.broadcast %5 : vector<2x8x1xi32> to vector<2x8x50xi32>
    %7 = arith.cmpi eq, %6, %4 : vector<2x8x50xi32>
    %8 = arith.extui %7 : vector<2x8x50xi1> to vector<2x8x50xi32>
    %9 = arith.sitofp %8 : vector<2x8x50xi32> to vector<2x8x50xf32>
    %10 = vector.shape_cast %9 : vector<2x8x50xf32> to vector<16x50xf32>
    %cst_5 = arith.constant dense<0.000000e+00> : vector<16x96xf32>
    %11 = tpu.matmul %10, %2, %cst_5 {dimension_numbers = #tpu.dot_dimension_numbers<[1], [0], [0], [1], [0, 0, 1, 1], [], []>} : vector<16x50xf32>, vector<50x96xf32>, vector<16x96xf32> -> vector<16x96xf32>
    %c0_6 = arith.constant 0 : index
    %c0_7 = arith.constant 0 : index
    %12 = vector.load %arg4[%c0_6, %c0_7] : memref<1x96xf32, #tpu.memory_space<vmem>>, vector<1x96xf32>
    %13 = vector.broadcast %12 : vector<1x96xf32> to vector<16x96xf32>
    %14 = arith.addf %11, %13 : vector<16x96xf32>
    %15 = vector.shape_cast %14 : vector<16x96xf32> to vector<2x8x96xf32>
    %c0_8 = arith.constant 0 : index
    %c0_9 = arith.constant 0 : index
    %16 = vector.load %arg3[%c0_8, %c0_9] : memref<32x96xf32, #tpu.memory_space<vmem>>, vector<32x96xf32>
    %c0_10 = arith.constant 0 : index
    %c0_11 = arith.constant 0 : index
    %17 = vector.load %arg5[%c0_10, %c0_11] : memref<1x96xf32, #tpu.memory_space<vmem>>, vector<1x96xf32>
    %cst_12 = arith.constant 0.000000e+00 : f32
    %18 = vector.broadcast %cst_12 : f32 to vector<2x32xf32>
    %19 = vector.extract_strided_slice %15 {offsets = [0, 0, 0], sizes = [2, 1, 96], strides = [1, 1, 1]} : vector<2x8x96xf32> to vector<2x1x96xf32>
    %20 = vector.shape_cast %19 : vector<2x1x96xf32> to vector<2x96xf32>
    %cst_13 = arith.constant dense<0.000000e+00> : vector<2x96xf32>
    %21 = tpu.matmul %18, %16, %cst_13 {dimension_numbers = #tpu.dot_dimension_numbers<[1], [0], [0], [1], [0, 0, 1, 1], [], []>} : vector<2x32xf32>, vector<32x96xf32>, vector<2x96xf32> -> vector<2x96xf32>
    %22 = vector.broadcast %17 : vector<1x96xf32> to vector<2x96xf32>
    %23 = arith.addf %21, %22 : vector<2x96xf32>
    %24 = vector.extract_strided_slice %20 {offsets = [0, 0], sizes = [2, 32], strides = [1, 1]} : vector<2x96xf32> to vector<2x32xf32>
    %25 = vector.extract_strided_slice %23 {offsets = [0, 0], sizes = [2, 32], strides = [1, 1]} : vector<2x96xf32> to vector<2x32xf32>
    %26 = arith.addf %24, %25 : vector<2x32xf32>
    %27 = arith.negf %26 : vector<2x32xf32>
    %28 = math.exp %27 : vector<2x32xf32>
    %cst_14 = arith.constant 1.000000e+00 : f32
    %29 = vector.broadcast %cst_14 : f32 to vector<2x32xf32>
    %30 = arith.addf %29, %28 : vector<2x32xf32>
    %31 = arith.divf %29, %30 : vector<2x32xf32>
    %32 = vector.extract_strided_slice %20 {offsets = [0, 32], sizes = [2, 32], strides = [1, 1]} : vector<2x96xf32> to vector<2x32xf32>
    %33 = vector.extract_strided_slice %23 {offsets = [0, 32], sizes = [2, 32], strides = [1, 1]} : vector<2x96xf32> to vector<2x32xf32>
    %34 = arith.addf %32, %33 : vector<2x32xf32>
    %35 = arith.negf %34 : vector<2x32xf32>
    %36 = math.exp %35 : vector<2x32xf32>
    %cst_15 = arith.constant 1.000000e+00 : f32
    %37 = vector.broadcast %cst_15 : f32 to vector<2x32xf32>
    %38 = arith.addf %37, %36 : vector<2x32xf32>
    %39 = arith.divf %37, %38 : vector<2x32xf32>
    %40 = vector.extract_strided_slice %20 {offsets = [0, 64], sizes = [2, 32], strides = [1, 1]} : vector<2x96xf32> to vector<2x32xf32>
    %41 = vector.extract_strided_slice %23 {offsets = [0, 64], sizes = [2, 32], strides = [1, 1]} : vector<2x96xf32> to vector<2x32xf32>
    %42 = arith.mulf %31, %41 : vector<2x32xf32>
    %43 = arith.addf %40, %42 : vector<2x32xf32>
    %44 = math.tanh %43 : vector<2x32xf32>
    %cst_16 = arith.constant 1.000000e+00 : f32
    %45 = vector.broadcast %cst_16 : f32 to vector<2x32xf32>
    %46 = arith.subf %45, %39 : vector<2x32xf32>
    %47 = arith.mulf %46, %44 : vector<2x32xf32>
    %48 = arith.mulf %39, %18 : vector<2x32xf32>
    %49 = arith.addf %47, %48 : vector<2x32xf32>
    %50 = vector.extract_strided_slice %15 {offsets = [0, 1, 0], sizes = [2, 1, 96], strides = [1, 1, 1]} : vector<2x8x96xf32> to vector<2x1x96xf32>
    %51 = vector.shape_cast %50 : vector<2x1x96xf32> to vector<2x96xf32>
    %cst_17 = arith.constant dense<0.000000e+00> : vector<2x96xf32>
    %52 = tpu.matmul %49, %16, %cst_17 {dimension_numbers = #tpu.dot_dimension_numbers<[1], [0], [0], [1], [0, 0, 1, 1], [], []>} : vector<2x32xf32>, vector<32x96xf32>, vector<2x96xf32> -> vector<2x96xf32>
    %53 = vector.broadcast %17 : vector<1x96xf32> to vector<2x96xf32>
    %54 = arith.addf %52, %53 : vector<2x96xf32>
    %55 = vector.extract_strided_slice %51 {offsets = [0, 0], sizes = [2, 32], strides = [1, 1]} : vector<2x96xf32> to vector<2x32xf32>
    %56 = vector.extract_strided_slice %54 {offsets = [0, 0], sizes = [2, 32], strides = [1, 1]} : vector<2x96xf32> to vector<2x32xf32>
    %57 = arith.addf %55, %56 : vector<2x32xf32>
    %58 = arith.negf %57 : vector<2x32xf32>
    %59 = math.exp %58 : vector<2x32xf32>
    %cst_18 = arith.constant 1.000000e+00 : f32
    %60 = vector.broadcast %cst_18 : f32 to vector<2x32xf32>
    %61 = arith.addf %60, %59 : vector<2x32xf32>
    %62 = arith.divf %60, %61 : vector<2x32xf32>
    %63 = vector.extract_strided_slice %51 {offsets = [0, 32], sizes = [2, 32], strides = [1, 1]} : vector<2x96xf32> to vector<2x32xf32>
    %64 = vector.extract_strided_slice %54 {offsets = [0, 32], sizes = [2, 32], strides = [1, 1]} : vector<2x96xf32> to vector<2x32xf32>
    %65 = arith.addf %63, %64 : vector<2x32xf32>
    %66 = arith.negf %65 : vector<2x32xf32>
    %67 = math.exp %66 : vector<2x32xf32>
    %cst_19 = arith.constant 1.000000e+00 : f32
    %68 = vector.broadcast %cst_19 : f32 to vector<2x32xf32>
    %69 = arith.addf %68, %67 : vector<2x32xf32>
    %70 = arith.divf %68, %69 : vector<2x32xf32>
    %71 = vector.extract_strided_slice %51 {offsets = [0, 64], sizes = [2, 32], strides = [1, 1]} : vector<2x96xf32> to vector<2x32xf32>
    %72 = vector.extract_strided_slice %54 {offsets = [0, 64], sizes = [2, 32], strides = [1, 1]} : vector<2x96xf32> to vector<2x32xf32>
    %73 = arith.mulf %62, %72 : vector<2x32xf32>
    %74 = arith.addf %71, %73 : vector<2x32xf32>
    %75 = math.tanh %74 : vector<2x32xf32>
    %cst_20 = arith.constant 1.000000e+00 : f32
    %76 = vector.broadcast %cst_20 : f32 to vector<2x32xf32>
    %77 = arith.subf %76, %70 : vector<2x32xf32>
    %78 = arith.mulf %77, %75 : vector<2x32xf32>
    %79 = arith.mulf %70, %49 : vector<2x32xf32>
    %80 = arith.addf %78, %79 : vector<2x32xf32>
    %81 = vector.extract_strided_slice %15 {offsets = [0, 2, 0], sizes = [2, 1, 96], strides = [1, 1, 1]} : vector<2x8x96xf32> to vector<2x1x96xf32>
    %82 = vector.shape_cast %81 : vector<2x1x96xf32> to vector<2x96xf32>
    %cst_21 = arith.constant dense<0.000000e+00> : vector<2x96xf32>
    %83 = tpu.matmul %80, %16, %cst_21 {dimension_numbers = #tpu.dot_dimension_numbers<[1], [0], [0], [1], [0, 0, 1, 1], [], []>} : vector<2x32xf32>, vector<32x96xf32>, vector<2x96xf32> -> vector<2x96xf32>
    %84 = vector.broadcast %17 : vector<1x96xf32> to vector<2x96xf32>
    %85 = arith.addf %83, %84 : vector<2x96xf32>
    %86 = vector.extract_strided_slice %82 {offsets = [0, 0], sizes = [2, 32], strides = [1, 1]} : vector<2x96xf32> to vector<2x32xf32>
    %87 = vector.extract_strided_slice %85 {offsets = [0, 0], sizes = [2, 32], strides = [1, 1]} : vector<2x96xf32> to vector<2x32xf32>
    %88 = arith.addf %86, %87 : vector<2x32xf32>
    %89 = arith.negf %88 : vector<2x32xf32>
    %90 = math.exp %89 : vector<2x32xf32>
    %cst_22 = arith.constant 1.000000e+00 : f32
    %91 = vector.broadcast %cst_22 : f32 to vector<2x32xf32>
    %92 = arith.addf %91, %90 : vector<2x32xf32>
    %93 = arith.divf %91, %92 : vector<2x32xf32>
    %94 = vector.extract_strided_slice %82 {offsets = [0, 32], sizes = [2, 32], strides = [1, 1]} : vector<2x96xf32> to vector<2x32xf32>
    %95 = vector.extract_strided_slice %85 {offsets = [0, 32], sizes = [2, 32], strides = [1, 1]} : vector<2x96xf32> to vector<2x32xf32>
    %96 = arith.addf %94, %95 : vector<2x32xf32>
    %97 = arith.negf %96 : vector<2x32xf32>
    %98 = math.exp %97 : vector<2x32xf32>
    %cst_23 = arith.constant 1.000000e+00 : f32
    %99 = vector.broadcast %cst_23 : f32 to vector<2x32xf32>
    %100 = arith.addf %99, %98 : vector<2x32xf32>
    %101 = arith.divf %99, %100 : vector<2x32xf32>
    %102 = vector.extract_strided_slice %82 {offsets = [0, 64], sizes = [2, 32], strides = [1, 1]} : vector<2x96xf32> to vector<2x32xf32>
    %103 = vector.extract_strided_slice %85 {offsets = [0, 64], sizes = [2, 32], strides = [1, 1]} : vector<2x96xf32> to vector<2x32xf32>
    %104 = arith.mulf %93, %103 : vector<2x32xf32>
    %105 = arith.addf %102, %104 : vector<2x32xf32>
    %106 = math.tanh %105 : vector<2x32xf32>
    %cst_24 = arith.constant 1.000000e+00 : f32
    %107 = vector.broadcast %cst_24 : f32 to vector<2x32xf32>
    %108 = arith.subf %107, %101 : vector<2x32xf32>
    %109 = arith.mulf %108, %106 : vector<2x32xf32>
    %110 = arith.mulf %101, %80 : vector<2x32xf32>
    %111 = arith.addf %109, %110 : vector<2x32xf32>
    %112 = vector.extract_strided_slice %15 {offsets = [0, 3, 0], sizes = [2, 1, 96], strides = [1, 1, 1]} : vector<2x8x96xf32> to vector<2x1x96xf32>
    %113 = vector.shape_cast %112 : vector<2x1x96xf32> to vector<2x96xf32>
    %cst_25 = arith.constant dense<0.000000e+00> : vector<2x96xf32>
    %114 = tpu.matmul %111, %16, %cst_25 {dimension_numbers = #tpu.dot_dimension_numbers<[1], [0], [0], [1], [0, 0, 1, 1], [], []>} : vector<2x32xf32>, vector<32x96xf32>, vector<2x96xf32> -> vector<2x96xf32>
    %115 = vector.broadcast %17 : vector<1x96xf32> to vector<2x96xf32>
    %116 = arith.addf %114, %115 : vector<2x96xf32>
    %117 = vector.extract_strided_slice %113 {offsets = [0, 0], sizes = [2, 32], strides = [1, 1]} : vector<2x96xf32> to vector<2x32xf32>
    %118 = vector.extract_strided_slice %116 {offsets = [0, 0], sizes = [2, 32], strides = [1, 1]} : vector<2x96xf32> to vector<2x32xf32>
    %119 = arith.addf %117, %118 : vector<2x32xf32>
    %120 = arith.negf %119 : vector<2x32xf32>
    %121 = math.exp %120 : vector<2x32xf32>
    %cst_26 = arith.constant 1.000000e+00 : f32
    %122 = vector.broadcast %cst_26 : f32 to vector<2x32xf32>
    %123 = arith.addf %122, %121 : vector<2x32xf32>
    %124 = arith.divf %122, %123 : vector<2x32xf32>
    %125 = vector.extract_strided_slice %113 {offsets = [0, 32], sizes = [2, 32], strides = [1, 1]} : vector<2x96xf32> to vector<2x32xf32>
    %126 = vector.extract_strided_slice %116 {offsets = [0, 32], sizes = [2, 32], strides = [1, 1]} : vector<2x96xf32> to vector<2x32xf32>
    %127 = arith.addf %125, %126 : vector<2x32xf32>
    %128 = arith.negf %127 : vector<2x32xf32>
    %129 = math.exp %128 : vector<2x32xf32>
    %cst_27 = arith.constant 1.000000e+00 : f32
    %130 = vector.broadcast %cst_27 : f32 to vector<2x32xf32>
    %131 = arith.addf %130, %129 : vector<2x32xf32>
    %132 = arith.divf %130, %131 : vector<2x32xf32>
    %133 = vector.extract_strided_slice %113 {offsets = [0, 64], sizes = [2, 32], strides = [1, 1]} : vector<2x96xf32> to vector<2x32xf32>
    %134 = vector.extract_strided_slice %116 {offsets = [0, 64], sizes = [2, 32], strides = [1, 1]} : vector<2x96xf32> to vector<2x32xf32>
    %135 = arith.mulf %124, %134 : vector<2x32xf32>
    %136 = arith.addf %133, %135 : vector<2x32xf32>
    %137 = math.tanh %136 : vector<2x32xf32>
    %cst_28 = arith.constant 1.000000e+00 : f32
    %138 = vector.broadcast %cst_28 : f32 to vector<2x32xf32>
    %139 = arith.subf %138, %132 : vector<2x32xf32>
    %140 = arith.mulf %139, %137 : vector<2x32xf32>
    %141 = arith.mulf %132, %111 : vector<2x32xf32>
    %142 = arith.addf %140, %141 : vector<2x32xf32>
    %143 = vector.extract_strided_slice %15 {offsets = [0, 4, 0], sizes = [2, 1, 96], strides = [1, 1, 1]} : vector<2x8x96xf32> to vector<2x1x96xf32>
    %144 = vector.shape_cast %143 : vector<2x1x96xf32> to vector<2x96xf32>
    %cst_29 = arith.constant dense<0.000000e+00> : vector<2x96xf32>
    %145 = tpu.matmul %142, %16, %cst_29 {dimension_numbers = #tpu.dot_dimension_numbers<[1], [0], [0], [1], [0, 0, 1, 1], [], []>} : vector<2x32xf32>, vector<32x96xf32>, vector<2x96xf32> -> vector<2x96xf32>
    %146 = vector.broadcast %17 : vector<1x96xf32> to vector<2x96xf32>
    %147 = arith.addf %145, %146 : vector<2x96xf32>
    %148 = vector.extract_strided_slice %144 {offsets = [0, 0], sizes = [2, 32], strides = [1, 1]} : vector<2x96xf32> to vector<2x32xf32>
    %149 = vector.extract_strided_slice %147 {offsets = [0, 0], sizes = [2, 32], strides = [1, 1]} : vector<2x96xf32> to vector<2x32xf32>
    %150 = arith.addf %148, %149 : vector<2x32xf32>
    %151 = arith.negf %150 : vector<2x32xf32>
    %152 = math.exp %151 : vector<2x32xf32>
    %cst_30 = arith.constant 1.000000e+00 : f32
    %153 = vector.broadcast %cst_30 : f32 to vector<2x32xf32>
    %154 = arith.addf %153, %152 : vector<2x32xf32>
    %155 = arith.divf %153, %154 : vector<2x32xf32>
    %156 = vector.extract_strided_slice %144 {offsets = [0, 32], sizes = [2, 32], strides = [1, 1]} : vector<2x96xf32> to vector<2x32xf32>
    %157 = vector.extract_strided_slice %147 {offsets = [0, 32], sizes = [2, 32], strides = [1, 1]} : vector<2x96xf32> to vector<2x32xf32>
    %158 = arith.addf %156, %157 : vector<2x32xf32>
    %159 = arith.negf %158 : vector<2x32xf32>
    %160 = math.exp %159 : vector<2x32xf32>
    %cst_31 = arith.constant 1.000000e+00 : f32
    %161 = vector.broadcast %cst_31 : f32 to vector<2x32xf32>
    %162 = arith.addf %161, %160 : vector<2x32xf32>
    %163 = arith.divf %161, %162 : vector<2x32xf32>
    %164 = vector.extract_strided_slice %144 {offsets = [0, 64], sizes = [2, 32], strides = [1, 1]} : vector<2x96xf32> to vector<2x32xf32>
    %165 = vector.extract_strided_slice %147 {offsets = [0, 64], sizes = [2, 32], strides = [1, 1]} : vector<2x96xf32> to vector<2x32xf32>
    %166 = arith.mulf %155, %165 : vector<2x32xf32>
    %167 = arith.addf %164, %166 : vector<2x32xf32>
    %168 = math.tanh %167 : vector<2x32xf32>
    %cst_32 = arith.constant 1.000000e+00 : f32
    %169 = vector.broadcast %cst_32 : f32 to vector<2x32xf32>
    %170 = arith.subf %169, %163 : vector<2x32xf32>
    %171 = arith.mulf %170, %168 : vector<2x32xf32>
    %172 = arith.mulf %163, %142 : vector<2x32xf32>
    %173 = arith.addf %171, %172 : vector<2x32xf32>
    %174 = vector.extract_strided_slice %15 {offsets = [0, 5, 0], sizes = [2, 1, 96], strides = [1, 1, 1]} : vector<2x8x96xf32> to vector<2x1x96xf32>
    %175 = vector.shape_cast %174 : vector<2x1x96xf32> to vector<2x96xf32>
    %cst_33 = arith.constant dense<0.000000e+00> : vector<2x96xf32>
    %176 = tpu.matmul %173, %16, %cst_33 {dimension_numbers = #tpu.dot_dimension_numbers<[1], [0], [0], [1], [0, 0, 1, 1], [], []>} : vector<2x32xf32>, vector<32x96xf32>, vector<2x96xf32> -> vector<2x96xf32>
    %177 = vector.broadcast %17 : vector<1x96xf32> to vector<2x96xf32>
    %178 = arith.addf %176, %177 : vector<2x96xf32>
    %179 = vector.extract_strided_slice %175 {offsets = [0, 0], sizes = [2, 32], strides = [1, 1]} : vector<2x96xf32> to vector<2x32xf32>
    %180 = vector.extract_strided_slice %178 {offsets = [0, 0], sizes = [2, 32], strides = [1, 1]} : vector<2x96xf32> to vector<2x32xf32>
    %181 = arith.addf %179, %180 : vector<2x32xf32>
    %182 = arith.negf %181 : vector<2x32xf32>
    %183 = math.exp %182 : vector<2x32xf32>
    %cst_34 = arith.constant 1.000000e+00 : f32
    %184 = vector.broadcast %cst_34 : f32 to vector<2x32xf32>
    %185 = arith.addf %184, %183 : vector<2x32xf32>
    %186 = arith.divf %184, %185 : vector<2x32xf32>
    %187 = vector.extract_strided_slice %175 {offsets = [0, 32], sizes = [2, 32], strides = [1, 1]} : vector<2x96xf32> to vector<2x32xf32>
    %188 = vector.extract_strided_slice %178 {offsets = [0, 32], sizes = [2, 32], strides = [1, 1]} : vector<2x96xf32> to vector<2x32xf32>
    %189 = arith.addf %187, %188 : vector<2x32xf32>
    %190 = arith.negf %189 : vector<2x32xf32>
    %191 = math.exp %190 : vector<2x32xf32>
    %cst_35 = arith.constant 1.000000e+00 : f32
    %192 = vector.broadcast %cst_35 : f32 to vector<2x32xf32>
    %193 = arith.addf %192, %191 : vector<2x32xf32>
    %194 = arith.divf %192, %193 : vector<2x32xf32>
    %195 = vector.extract_strided_slice %175 {offsets = [0, 64], sizes = [2, 32], strides = [1, 1]} : vector<2x96xf32> to vector<2x32xf32>
    %196 = vector.extract_strided_slice %178 {offsets = [0, 64], sizes = [2, 32], strides = [1, 1]} : vector<2x96xf32> to vector<2x32xf32>
    %197 = arith.mulf %186, %196 : vector<2x32xf32>
    %198 = arith.addf %195, %197 : vector<2x32xf32>
    %199 = math.tanh %198 : vector<2x32xf32>
    %cst_36 = arith.constant 1.000000e+00 : f32
    %200 = vector.broadcast %cst_36 : f32 to vector<2x32xf32>
    %201 = arith.subf %200, %194 : vector<2x32xf32>
    %202 = arith.mulf %201, %199 : vector<2x32xf32>
    %203 = arith.mulf %194, %173 : vector<2x32xf32>
    %204 = arith.addf %202, %203 : vector<2x32xf32>
    %205 = vector.extract_strided_slice %15 {offsets = [0, 6, 0], sizes = [2, 1, 96], strides = [1, 1, 1]} : vector<2x8x96xf32> to vector<2x1x96xf32>
    %206 = vector.shape_cast %205 : vector<2x1x96xf32> to vector<2x96xf32>
    %cst_37 = arith.constant dense<0.000000e+00> : vector<2x96xf32>
    %207 = tpu.matmul %204, %16, %cst_37 {dimension_numbers = #tpu.dot_dimension_numbers<[1], [0], [0], [1], [0, 0, 1, 1], [], []>} : vector<2x32xf32>, vector<32x96xf32>, vector<2x96xf32> -> vector<2x96xf32>
    %208 = vector.broadcast %17 : vector<1x96xf32> to vector<2x96xf32>
    %209 = arith.addf %207, %208 : vector<2x96xf32>
    %210 = vector.extract_strided_slice %206 {offsets = [0, 0], sizes = [2, 32], strides = [1, 1]} : vector<2x96xf32> to vector<2x32xf32>
    %211 = vector.extract_strided_slice %209 {offsets = [0, 0], sizes = [2, 32], strides = [1, 1]} : vector<2x96xf32> to vector<2x32xf32>
    %212 = arith.addf %210, %211 : vector<2x32xf32>
    %213 = arith.negf %212 : vector<2x32xf32>
    %214 = math.exp %213 : vector<2x32xf32>
    %cst_38 = arith.constant 1.000000e+00 : f32
    %215 = vector.broadcast %cst_38 : f32 to vector<2x32xf32>
    %216 = arith.addf %215, %214 : vector<2x32xf32>
    %217 = arith.divf %215, %216 : vector<2x32xf32>
    %218 = vector.extract_strided_slice %206 {offsets = [0, 32], sizes = [2, 32], strides = [1, 1]} : vector<2x96xf32> to vector<2x32xf32>
    %219 = vector.extract_strided_slice %209 {offsets = [0, 32], sizes = [2, 32], strides = [1, 1]} : vector<2x96xf32> to vector<2x32xf32>
    %220 = arith.addf %218, %219 : vector<2x32xf32>
    %221 = arith.negf %220 : vector<2x32xf32>
    %222 = math.exp %221 : vector<2x32xf32>
    %cst_39 = arith.constant 1.000000e+00 : f32
    %223 = vector.broadcast %cst_39 : f32 to vector<2x32xf32>
    %224 = arith.addf %223, %222 : vector<2x32xf32>
    %225 = arith.divf %223, %224 : vector<2x32xf32>
    %226 = vector.extract_strided_slice %206 {offsets = [0, 64], sizes = [2, 32], strides = [1, 1]} : vector<2x96xf32> to vector<2x32xf32>
    %227 = vector.extract_strided_slice %209 {offsets = [0, 64], sizes = [2, 32], strides = [1, 1]} : vector<2x96xf32> to vector<2x32xf32>
    %228 = arith.mulf %217, %227 : vector<2x32xf32>
    %229 = arith.addf %226, %228 : vector<2x32xf32>
    %230 = math.tanh %229 : vector<2x32xf32>
    %cst_40 = arith.constant 1.000000e+00 : f32
    %231 = vector.broadcast %cst_40 : f32 to vector<2x32xf32>
    %232 = arith.subf %231, %225 : vector<2x32xf32>
    %233 = arith.mulf %232, %230 : vector<2x32xf32>
    %234 = arith.mulf %225, %204 : vector<2x32xf32>
    %235 = arith.addf %233, %234 : vector<2x32xf32>
    %236 = vector.extract_strided_slice %15 {offsets = [0, 7, 0], sizes = [2, 1, 96], strides = [1, 1, 1]} : vector<2x8x96xf32> to vector<2x1x96xf32>
    %237 = vector.shape_cast %236 : vector<2x1x96xf32> to vector<2x96xf32>
    %cst_41 = arith.constant dense<0.000000e+00> : vector<2x96xf32>
    %238 = tpu.matmul %235, %16, %cst_41 {dimension_numbers = #tpu.dot_dimension_numbers<[1], [0], [0], [1], [0, 0, 1, 1], [], []>} : vector<2x32xf32>, vector<32x96xf32>, vector<2x96xf32> -> vector<2x96xf32>
    %239 = vector.broadcast %17 : vector<1x96xf32> to vector<2x96xf32>
    %240 = arith.addf %238, %239 : vector<2x96xf32>
    %241 = vector.extract_strided_slice %237 {offsets = [0, 0], sizes = [2, 32], strides = [1, 1]} : vector<2x96xf32> to vector<2x32xf32>
    %242 = vector.extract_strided_slice %240 {offsets = [0, 0], sizes = [2, 32], strides = [1, 1]} : vector<2x96xf32> to vector<2x32xf32>
    %243 = arith.addf %241, %242 : vector<2x32xf32>
    %244 = arith.negf %243 : vector<2x32xf32>
    %245 = math.exp %244 : vector<2x32xf32>
    %cst_42 = arith.constant 1.000000e+00 : f32
    %246 = vector.broadcast %cst_42 : f32 to vector<2x32xf32>
    %247 = arith.addf %246, %245 : vector<2x32xf32>
    %248 = arith.divf %246, %247 : vector<2x32xf32>
    %249 = vector.extract_strided_slice %237 {offsets = [0, 32], sizes = [2, 32], strides = [1, 1]} : vector<2x96xf32> to vector<2x32xf32>
    %250 = vector.extract_strided_slice %240 {offsets = [0, 32], sizes = [2, 32], strides = [1, 1]} : vector<2x96xf32> to vector<2x32xf32>
    %251 = arith.addf %249, %250 : vector<2x32xf32>
    %252 = arith.negf %251 : vector<2x32xf32>
    %253 = math.exp %252 : vector<2x32xf32>
    %cst_43 = arith.constant 1.000000e+00 : f32
    %254 = vector.broadcast %cst_43 : f32 to vector<2x32xf32>
    %255 = arith.addf %254, %253 : vector<2x32xf32>
    %256 = arith.divf %254, %255 : vector<2x32xf32>
    %257 = vector.extract_strided_slice %237 {offsets = [0, 64], sizes = [2, 32], strides = [1, 1]} : vector<2x96xf32> to vector<2x32xf32>
    %258 = vector.extract_strided_slice %240 {offsets = [0, 64], sizes = [2, 32], strides = [1, 1]} : vector<2x96xf32> to vector<2x32xf32>
    %259 = arith.mulf %248, %258 : vector<2x32xf32>
    %260 = arith.addf %257, %259 : vector<2x32xf32>
    %261 = math.tanh %260 : vector<2x32xf32>
    %cst_44 = arith.constant 1.000000e+00 : f32
    %262 = vector.broadcast %cst_44 : f32 to vector<2x32xf32>
    %263 = arith.subf %262, %256 : vector<2x32xf32>
    %264 = arith.mulf %263, %261 : vector<2x32xf32>
    %265 = arith.mulf %256, %235 : vector<2x32xf32>
    %266 = arith.addf %264, %265 : vector<2x32xf32>
    %267 = tpu.concatenate %49, %80, %111, %142, %173, %204, %235, %266 in 1 : vector<2x32xf32>, vector<2x32xf32>, vector<2x32xf32>, vector<2x32xf32>, vector<2x32xf32>, vector<2x32xf32>, vector<2x32xf32>, vector<2x32xf32> -> vector<2x256xf32>
    %c0_45 = arith.constant 0 : index
    %c0_46 = arith.constant 0 : index
    %268 = vector.load %arg6[%c0_45, %c0_46] : memref<2x256xf32, #tpu.memory_space<vmem>>, vector<2x256xf32>
    tpu.vector_store %arg6[%c0_45, %c0_46], %267 {strides = array<i32>} : memref<2x256xf32, #tpu.memory_space<vmem>>, vector<2x256xf32>,
    %c0_47 = arith.constant 0 : index
    %c0_48 = arith.constant 0 : index
    %c0_49 = arith.constant 0 : index
    %269 = vector.load %arg7[%c0_47, %c0_48, %c0_49] : memref<1x2x32xf32, #tpu.memory_space<vmem>>, vector<1x2x32xf32>
    %270 = vector.shape_cast %269 : vector<1x2x32xf32> to vector<2x32xf32>
    %271 = vector.shape_cast %266 : vector<2x32xf32> to vector<1x2x32xf32>
    tpu.vector_store %arg7[%c0_47, %c0_48, %c0_49], %271 {strides = array<i32>} : memref<1x2x32xf32, #tpu.memory_space<vmem>>, vector<1x2x32xf32>,
    return
  }
}

</mosaic_0001>

<llo_original>
// kernel: encoder_forward.1
$region0: #{encoder_forward.1}
  #allocation0 [shape = 'u32[]', space=smem, size = 0x4, offset = 0x4, fixed_abs, tag = 'smem constant byte address 0x4 - core index']
  #allocation1 [shape = 'u32[72,128]{1,0:T(1,128)}', space=vmem, size = 0x9000, scoped, tag = 'internal scratch']
  %s0 = inlined_call_operand.vmem [shape: s32[2,8], index: 0, kind: input, shape index: {}]
  %s1 = inlined_call_operand.vmem [shape: f32[50,32], index: 1, kind: input, shape index: {}]
  %s2 = inlined_call_operand.vmem [shape: f32[32,96], index: 2, kind: input, shape index: {}]
  %s3 = inlined_call_operand.vmem [shape: f32[32,96], index: 3, kind: input, shape index: {}]
  %s4 = inlined_call_operand.vmem [shape: f32[1,96], index: 4, kind: input, shape index: {}]
  %s5 = inlined_call_operand.vmem [shape: f32[1,96], index: 5, kind: input, shape index: {}]
  %s6 = inlined_call_operand.vmem [shape: f32[2,256], index: 6, kind: output, shape index: {0}]
  %s7 = inlined_call_operand.hbm [shape: f32[1,2,32], index: 7, kind: output, shape index: {1}]
  %8 = xla_tuple %s6, %s7
  %s9 = sld [smem:[#allocation0]]
  $region42: #{encoder_forward.1} parent=0
    _
  %s11 = ssub.s32 1, %s9
  %s12 = scalar_select 0, %s11, %s9
  $region1: #{encoder_forward.1} parent=0
    #allocation2 [shape = 'u8[1024]{0}', space=vmem, size = 0x400, scoped, tag = 'output window, operand 1, single buffered']
    #allocation3 [shape = 's32[1]{0}', space=sflag, size = 0x4, scoped, tag = 'scoped memory for encoder_forward.1']
    %13 = vsyncpa [#allocation3], 0
    // Predicated region
    $region2: #{encoder_forward.1} parent=1 // pred_check
      _
    $region3: #{encoder_forward.1} parent=1 // pred_check_branch
      %15 = sbr.rel (0) target = $region5
    $region4: #{encoder_forward.1} parent=1 // pred_region
      _
    $region5: #{encoder_forward.1} parent=1 // pred_fallthru
      _
    // Predicated region
    $region6: #{encoder_forward.1} parent=1 // pred_check
      _
    $region7: #{encoder_forward.1} parent=1 // pred_check_branch
      %17 = sbr.rel (0) target = $region9
    $region8: #{encoder_forward.1} parent=1 // pred_region
      _
    $region9: #{encoder_forward.1} parent=1 // pred_fallthru
      _
    // Predicated region
    $region10: #{encoder_forward.1} parent=1 // pred_check
      _
    $region11: #{encoder_forward.1} parent=1 // pred_check_branch
      %19 = sbr.rel (0) target = $region13
    $region12: #{encoder_forward.1} parent=1 // pred_region
      _
    $region13: #{encoder_forward.1} parent=1 // pred_fallthru
      _
    // Predicated region
    $region14: #{encoder_forward.1} parent=1 // pred_check
      _
    $region15: #{encoder_forward.1} parent=1 // pred_check_branch
      %21 = sbr.rel (0) target = $region17
    $region16: #{encoder_forward.1} parent=1 // pred_region
      _
    $region17: #{encoder_forward.1} parent=1 // pred_fallthru
      _
    // Predicated region
    $region18: #{encoder_forward.1} parent=1 // pred_check
      _
    $region19: #{encoder_forward.1} parent=1 // pred_check_branch
      %23 = sbr.rel (0) target = $region21
    $region20: #{encoder_forward.1} parent=1 // pred_region
      _
    $region21: #{encoder_forward.1} parent=1 // pred_fallthru
      _
    // Predicated region
    $region22: #{encoder_forward.1} parent=1 // pred_check
      _
    $region23: #{encoder_forward.1} parent=1 // pred_check_branch
      %25 = sbr.rel (0) target = $region25
    $region24: #{encoder_forward.1} parent=1 // pred_region
      _
    $region25: #{encoder_forward.1} parent=1 // pred_fallthru
      _
    %v26 = vld [vmem:[%s1] sm:$0xff]
    %v27 = vld [vmem:[%s1 + $0x8] sm:$0xff]
    %v28 = vld [vmem:[%s1 + $0x10] sm:$0xff]
    %v29 = vld [vmem:[%s1 + $0x18] sm:$0xff]
    %v30 = vld [vmem:[%s1 + $0x20] sm:$0xff]
    %v31 = vld [vmem:[%s1 + $0x28] sm:$0xff]
    %v32 = vld [vmem:[%s1 + $0x30] sm:$0x3]
    %v33 = vld [vmem:[%s2] sm:$0xff]
    %v34 = vld [vmem:[%s2 + $0x8] sm:$0xff]
    %v35 = vld [vmem:[%s2 + $0x10] sm:$0xff]
    %v36 = vld [vmem:[%s2 + $0x18] sm:$0xff]
    %vm37 = vcmask 261120
    %v39 = vsel %vm37, %v26, 0
    %v42 = vsel %vm37, %v27, 0
    %v45 = vsel %vm37, %v28, 0
    %v48 = vsel %vm37, %v29, 0
    %v51 = vsel %vm37, %v30, 0
    %v54 = vsel %vm37, %v31, 0
    %v57 = vsel %vm37, %v32, 0
    %59 = vmatpush.msra.mxu0 0.0
    %60 = vmatpush.msra.mxu0 0.0
    %61 = vmatpush.msra.mxu0 0.0
    %62 = vmatpush.msra.mxu0 0.0
    %63 = vmatpush.msra.mxu0 0.0
    %64 = vmatpush.msra.mxu0 0.0
    %65 = vmatpush.msra.mxu0 0.0
    %66 = vmatpush.msra.mxu0 0.0
    %67 = vmatpush.msra.mxu0 0.0
    %68 = vmatpush.msra.mxu0 0.0
    %69 = vmatpush.msra.mxu0 0.0
    %70 = vmatpush.msra.mxu0 0.0
    %71 = vmatpush.msra.mxu0 %v36
    %72 = vmatpush.msra.mxu0 %v35
    %73 = vmatpush.msra.mxu0 %v34
    %74 = vmatpush.msra.mxu0 %v33
    %75 = vmatmul.f32.gmra.mxu0 %v39
    %v76 = vpop.f32.mrf.mxu0
    %v77 = vadd.f32 0.0, %v76
    %78 = vmatmul.f32.gmra.mxu0 %v42
    %v79 = vpop.f32.mrf.mxu0
    %v80 = vadd.f32 0.0, %v79
    %81 = vmatmul.f32.gmra.mxu0 %v45
    %v82 = vpop.f32.mrf.mxu0
    %v83 = vadd.f32 0.0, %v82
    %84 = vmatmul.f32.gmra.mxu0 %v48
    %v85 = vpop.f32.mrf.mxu0
    %v86 = vadd.f32 0.0, %v85
    %87 = vmatmul.f32.gmra.mxu0 %v51
    %v88 = vpop.f32.mrf.mxu0
    %v89 = vadd.f32 0.0, %v88
    %90 = vmatmul.f32.gmra.mxu0 %v54
    %v91 = vpop.f32.mrf.mxu0
    %v92 = vadd.f32 0.0, %v91
    %93 = vmatmul.f32.gmra.mxu0 %v57
    %v94 = vpop.f32.mrf.mxu0
    %v95 = vadd.f32 0.0, %v94
    %96 = vdwg.mxu0
    %v97 = vld [vmem:[%s0] sm:$0x3]
    %v98 = vlaneseq
    %v99 = vand.u32 %v98, 127
    %v100 = vperm.slane %v97, 0
    %v101 = vlaneseq
    %v102 = vshrl.u32 %v101, 7
    %104 = vset.pattern.permute.xlu0 %v102
    %105 = vperm.xlu0 %104, %v100
    %v106 = vpop.permute.xlu0 %105
    %v107 = vperm.slane %v97, 1
    %v108 = vlaneseq
    %v109 = vshrl.u32 %v108, 7
    %111 = vset.pattern.permute.xlu0 %v109
    %112 = vperm.xlu0 %111, %v107
    %v113 = vpop.permute.xlu0 %112
    %vm114 = vcmp.eq.s32.totalorder %v106, %v99
    %vm115 = vcmp.eq.s32.totalorder %v113, %v99
    %v116 = vsel %vm114, 1, 0
    %v117 = vsel %vm115, 1, 0
    %v118 = vcvt.s32.f32 %v116
    %v119 = vcvt.s32.f32 %v117
    %v120 = vld [vmem:[%s4] sm:$0x1]
    %v122 = vperm.slane %v120, 0
    %vm124 = vcmask 408576
    %v126 = vsel %vm124, %v118, 0
    %v129 = vsel %vm124, %v119, 0
    %vm131 = vcmask 1041408
    %v133 = vsel %vm131, %v95, 0
    %135 = vmatpush.msra.mxu0 0.0
    %136 = vmatpush.msra.mxu0 0.0
    %137 = vmatpush.msra.mxu0 0.0
    %138 = vmatpush.msra.mxu0 0.0
    %139 = vmatpush.msra.mxu0 0.0
    %140 = vmatpush.msra.mxu0 0.0
    %141 = vmatpush.msra.mxu0 0.0
    %142 = vmatpush.msra.mxu0 0.0
    %143 = vmatpush.msra.mxu0 0.0
    %144 = vmatpush.msra.mxu0 %v133
    %145 = vmatpush.msra.mxu0 %v92
    %146 = vmatpush.msra.mxu0 %v89
    %147 = vmatpush.msra.mxu0 %v86
    %148 = vmatpush.msra.mxu0 %v83
    %149 = vmatpush.msra.mxu0 %v80
    %150 = vmatpush.msra.mxu0 %v77
    %151 = vmatmul.f32.gmra.mxu0 %v126
    %v152 = vpop.f32.mrf.mxu0
    %v153 = vadd.f32 %v122, %v152
    %154 = vmatmul.f32.gmra.mxu0 %v129
    %v155 = vpop.f32.mrf.mxu0
    %v156 = vadd.f32 %v122, %v155
    %157 = vdwg.mxu0
    %v158 = vld [vmem:[%s3] sm:$0xff]
    %v159 = vld [vmem:[%s3 + $0x8] sm:$0xff]
    %v160 = vld [vmem:[%s3 + $0x10] sm:$0xff]
    %v161 = vld [vmem:[%s3 + $0x18] sm:$0xff]
    %v162 = vld [vmem:[%s5] sm:$0x1]
    %v164 = vperm.slane %v162, 0
    %v167 = vsel %vm37, 0.0, 0
    %169 = vmatpush.msra.mxu0 0.0
    %170 = vmatpush.msra.mxu0 0.0
    %171 = vmatpush.msra.mxu0 0.0
    %172 = vmatpush.msra.mxu0 0.0
    %173 = vmatpush.msra.mxu0 0.0
    %174 = vmatpush.msra.mxu0 0.0
    %175 = vmatpush.msra.mxu0 0.0
    %176 = vmatpush.msra.mxu0 0.0
    %177 = vmatpush.msra.mxu0 0.0
    %178 = vmatpush.msra.mxu0 0.0
    %179 = vmatpush.msra.mxu0 0.0
    %180 = vmatpush.msra.mxu0 0.0
    %181 = vmatpush.msra.mxu0 %v161
    %182 = vmatpush.msra.mxu0 %v160
    %183 = vmatpush.msra.mxu0 %v159
    %184 = vmatpush.msra.mxu0 %v158
    %185 = vmatmul.f32.gmra.mxu0 %v167
    %v186 = vpop.f32.mrf.mxu0
    %v187 = vadd.f32 %v164, %v186
    %188 = vdwg.mxu0
    %v190 = vrot.slane %v187, 1
    %v193 = vadd.f32 %v153, %v187
    %v194 = vadd.f32 %v156, %v190
    %v195 = vxor.u32 %v193, 2147483648
    %v196 = vxor.u32 %v194, 2147483648
    %v197 = vmul.f32 %v195, 1.442695
    %v198 = vpow.pop %v197
    %v199 = vmul.f32 %v196, 1.442695
    %v200 = vpow.pop %v199
    %v201 = vadd.f32 %v198, 1.0
    %v202 = vadd.f32 %v200, 1.0
    %v203 = vrcp.pop %v201
    %v204 = vmul.f32 %v201, %v203
    %v205 = vsub.f32 1.0, %v204
    %v206 = vmul.f32 %v203, %v205
    %v207 = vadd.f32 %v203, %v206
    %vm208 = vweird.f32 %v201
    %vm209 = vweird.f32 %v203
    %vm210 = vmor %vm208, %vm209
    %v211 = vsel %vm210, %v203, %v207
    %v212 = vand.u32 2147483647, %v201
    %vm213 = vcmp.eq.f32.partialorder %v212, 8.507059e+37
    %v214 = vand.u32 %v201, 2147483648
    %v215 = vor.u32 1.1754944e-38, %v214
    %v216 = vsel %vm213, %v215, %v211
    %v217 = vmul.f32 1.0, %v216
    %v218 = vrcp.pop %v202
    %v219 = vmul.f32 %v202, %v218
    %v220 = vsub.f32 1.0, %v219
    %v221 = vmul.f32 %v218, %v220
    %v222 = vadd.f32 %v218, %v221
    %vm223 = vweird.f32 %v202
    %vm224 = vweird.f32 %v218
    %vm225 = vmor %vm223, %vm224
    %v226 = vsel %vm225, %v218, %v222
    %v227 = vand.u32 2147483647, %v202
    %vm228 = vcmp.eq.f32.partialorder %v227, 8.507059e+37
    %v229 = vand.u32 %v202, 2147483648
    %v230 = vor.u32 1.1754944e-38, %v229
    %v231 = vsel %vm228, %v230, %v226
    %v232 = vmul.f32 1.0, %v231
    %233 = vrot.lane.b32.xlu0 %v187, 64
    %v234 = vpop.permute.xlu0 %233
    %235 = vrot.lane.b32.xlu0 %v190, 64
    %v236 = vpop.permute.xlu0 %235
    %v239 = vmul.f32 %v217, %v234
    %v240 = vmul.f32 %v232, %v236
    %243 = vrot.lane.b32.xlu0 %v239, 64
    %v244 = vpop.permute.xlu0 %243
    %245 = vrot.lane.b32.xlu0 %v240, 64
    %v246 = vpop.permute.xlu0 %245
    %v249 = vadd.f32 %v153, %v244
    %v250 = vadd.f32 %v156, %v246
    %v251 = vtanh.pop %v249
    %v252 = vtanh.pop %v250
    %v253 = vsub.f32 1.0, %v217
    %v254 = vsub.f32 1.0, %v232
    %257 = vrot.lane.b32.xlu0 %v251, 96
    %v258 = vpop.permute.xlu0 %257
    %259 = vrot.lane.b32.xlu0 %v252, 96
    %v260 = vpop.permute.xlu0 %259
    %v263 = vmul.f32 %v253, %v258
    %v264 = vmul.f32 %v254, %v260
    %v265 = vmul.f32 %v217, 0.0
    %v266 = vmul.f32 %v232, 0.0
    %v267 = vadd.f32 %v263, %v265
    %v268 = vadd.f32 %v264, %v266
    %v271 = vrot.slane %v268, 7
    %vm272 = vcmask 1041409
    %v273 = vsel %vm272, %v271, %v267
    %274 = vrot.lane.b32.xlu0 %v273, 96
    %v275 = vpop.permute.xlu0 %274
    %v276 = vsel %vm37, %v275, 0
    %278 = vmatpush.msra.mxu0 0.0
    %279 = vmatpush.msra.mxu0 0.0
    %280 = vmatpush.msra.mxu0 0.0
    %281 = vmatpush.msra.mxu0 0.0
    %282 = vmatpush.msra.mxu0 0.0
    %283 = vmatpush.msra.mxu0 0.0
    %284 = vmatpush.msra.mxu0 0.0
    %285 = vmatpush.msra.mxu0 0.0
    %286 = vmatpush.msra.mxu0 0.0
    %287 = vmatpush.msra.mxu0 0.0
    %288 = vmatpush.msra.mxu0 0.0
    %289 = vmatpush.msra.mxu0 0.0
    %290 = vmatpush.msra.mxu0 %v161
    %291 = vmatpush.msra.mxu0 %v160
    %292 = vmatpush.msra.mxu0 %v159
    %293 = vmatpush.msra.mxu0 %v158
    %294 = vmatmul.f32.gmra.mxu0 %v276
    %v295 = vpop.f32.mrf.mxu0
    %v296 = vadd.f32 %v164, %v295
    %297 = vdwg.mxu0
    %v299 = vrot.slane %v296, 7
    %v302 = vadd.f32 %v153, %v299
    %v303 = vadd.f32 %v156, %v296
    %v304 = vxor.u32 %v302, 2147483648
    %v305 = vxor.u32 %v303, 2147483648
    %v306 = vmul.f32 %v304, 1.442695
    %v307 = vpow.pop %v306
    %v308 = vmul.f32 %v305, 1.442695
    %v309 = vpow.pop %v308
    %v310 = vadd.f32 %v307, 1.0
    %v311 = vadd.f32 %v309, 1.0
    %v312 = vrcp.pop %v310
    %v313 = vmul.f32 %v310, %v312
    %v314 = vsub.f32 1.0, %v313
    %v315 = vmul.f32 %v312, %v314
    %v316 = vadd.f32 %v312, %v315
    %vm317 = vweird.f32 %v310
    %vm318 = vweird.f32 %v312
    %vm319 = vmor %vm317, %vm318
    %v320 = vsel %vm319, %v312, %v316
    %v321 = vand.u32 2147483647, %v310
    %vm322 = vcmp.eq.f32.partialorder %v321, 8.507059e+37
    %v323 = vand.u32 %v310, 2147483648
    %v324 = vor.u32 1.1754944e-38, %v323
    %v325 = vsel %vm322, %v324, %v320
    %v326 = vmul.f32 1.0, %v325
    %v327 = vrcp.pop %v311
    %v328 = vmul.f32 %v311, %v327
    %v329 = vsub.f32 1.0, %v328
    %v330 = vmul.f32 %v327, %v329
    %v331 = vadd.f32 %v327, %v330
    %vm332 = vweird.f32 %v311
    %vm333 = vweird.f32 %v327
    %vm334 = vmor %vm332, %vm333
    %v335 = vsel %vm334, %v327, %v331
    %v336 = vand.u32 2147483647, %v311
    %vm337 = vcmp.eq.f32.partialorder %v336, 8.507059e+37
    %v338 = vand.u32 %v311, 2147483648
    %v339 = vor.u32 1.1754944e-38, %v338
    %v340 = vsel %vm337, %v339, %v335
    %v341 = vmul.f32 1.0, %v340
    %342 = vrot.lane.b32.xlu0 %v299, 64
    %v343 = vpop.permute.xlu0 %342
    %344 = vrot.lane.b32.xlu0 %v296, 64
    %v345 = vpop.permute.xlu0 %344
    %v348 = vmul.f32 %v326, %v343
    %v349 = vmul.f32 %v341, %v345
    %352 = vrot.lane.b32.xlu0 %v348, 64
    %v353 = vpop.permute.xlu0 %352
    %354 = vrot.lane.b32.xlu0 %v349, 64
    %v355 = vpop.permute.xlu0 %354
    %v358 = vadd.f32 %v153, %v353
    %v359 = vadd.f32 %v156, %v355
    %v360 = vtanh.pop %v358
    %v361 = vtanh.pop %v359
    %v362 = vsub.f32 1.0, %v326
    %v363 = vsub.f32 1.0, %v341
    %366 = vrot.lane.b32.xlu0 %v360, 96
    %v367 = vpop.permute.xlu0 %366
    %368 = vrot.lane.b32.xlu0 %v361, 96
    %v369 = vpop.permute.xlu0 %368
    %v372 = vmul.f32 %v362, %v367
    %v373 = vmul.f32 %v363, %v369
    %v374 = vrot.slane %v267, 7
    %v377 = vmul.f32 %v326, %v374
    %v378 = vmul.f32 %v341, %v271
    %v379 = vadd.f32 %v372, %v377
    %v380 = vadd.f32 %v373, %v378
    %v383 = vrot.slane %v379, 1
    %v384 = vsel %vm272, %v380, %v383
    %385 = vrot.lane.b32.xlu0 %v384, 96
    %v386 = vpop.permute.xlu0 %385
    %v387 = vsel %vm37, %v386, 0
    %389 = vmatpush.msra.mxu0 0.0
    %390 = vmatpush.msra.mxu0 0.0
    %391 = vmatpush.msra.mxu0 0.0
    %392 = vmatpush.msra.mxu0 0.0
    %393 = vmatpush.msra.mxu0 0.0
    %394 = vmatpush.msra.mxu0 0.0
    %395 = vmatpush.msra.mxu0 0.0
    %396 = vmatpush.msra.mxu0 0.0
    %397 = vmatpush.msra.mxu0 0.0
    %398 = vmatpush.msra.mxu0 0.0
    %399 = vmatpush.msra.mxu0 0.0
    %400 = vmatpush.msra.mxu0 0.0
    %401 = vmatpush.msra.mxu0 %v161
    %402 = vmatpush.msra.mxu0 %v160
    %403 = vmatpush.msra.mxu0 %v159
    %404 = vmatpush.msra.mxu0 %v158
    %405 = vmatmul.f32.gmra.mxu0 %v387
    %v406 = vpop.f32.mrf.mxu0
    %v407 = vadd.f32 %v164, %v406
    %408 = vdwg.mxu0
    %v410 = vrot.slane %v407, 6
    %v411 = vrot.slane %v407, 7
    %v414 = vadd.f32 %v153, %v410
    %v415 = vadd.f32 %v156, %v411
    %v416 = vxor.u32 %v414, 2147483648
    %v417 = vxor.u32 %v415, 2147483648
    %v418 = vmul.f32 %v416, 1.442695
    %v419 = vpow.pop %v418
    %v420 = vmul.f32 %v417, 1.442695
    %v421 = vpow.pop %v420
    %v422 = vadd.f32 %v419, 1.0
    %v423 = vadd.f32 %v421, 1.0
    %v424 = vrcp.pop %v422
    %v425 = vmul.f32 %v422, %v424
    %v426 = vsub.f32 1.0, %v425
    %v427 = vmul.f32 %v424, %v426
    %v428 = vadd.f32 %v424, %v427
    %vm429 = vweird.f32 %v422
    %vm430 = vweird.f32 %v424
    %vm431 = vmor %vm429, %vm430
    %v432 = vsel %vm431, %v424, %v428
    %v433 = vand.u32 2147483647, %v422
    %vm434 = vcmp.eq.f32.partialorder %v433, 8.507059e+37
    %v435 = vand.u32 %v422, 2147483648
    %v436 = vor.u32 1.1754944e-38, %v435
    %v437 = vsel %vm434, %v436, %v432
    %v438 = vmul.f32 1.0, %v437
    %v439 = vrcp.pop %v423
    %v440 = vmul.f32 %v423, %v439
    %v441 = vsub.f32 1.0, %v440
    %v442 = vmul.f32 %v439, %v441
    %v443 = vadd.f32 %v439, %v442
    %vm444 = vweird.f32 %v423
    %vm445 = vweird.f32 %v439
    %vm446 = vmor %vm444, %vm445
    %v447 = vsel %vm446, %v439, %v443
    %v448 = vand.u32 2147483647, %v423
    %vm449 = vcmp.eq.f32.partialorder %v448, 8.507059e+37
    %v450 = vand.u32 %v423, 2147483648
    %v451 = vor.u32 1.1754944e-38, %v450
    %v452 = vsel %vm449, %v451, %v447
    %v453 = vmul.f32 1.0, %v452
    %454 = vrot.lane.b32.xlu0 %v410, 64
    %v455 = vpop.permute.xlu0 %454
    %456 = vrot.lane.b32.xlu0 %v411, 64
    %v457 = vpop.permute.xlu0 %456
    %v460 = vmul.f32 %v438, %v455
    %v461 = vmul.f32 %v453, %v457
    %464 = vrot.lane.b32.xlu0 %v460, 64
    %v465 = vpop.permute.xlu0 %464
    %466 = vrot.lane.b32.xlu0 %v461, 64
    %v467 = vpop.permute.xlu0 %466
    %v470 = vadd.f32 %v153, %v465
    %v471 = vadd.f32 %v156, %v467
    %v472 = vtanh.pop %v470
    %v473 = vtanh.pop %v471
    %v474 = vsub.f32 1.0, %v438
    %v475 = vsub.f32 1.0, %v453
    %478 = vrot.lane.b32.xlu0 %v472, 96
    %v479 = vpop.permute.xlu0 %478
    %480 = vrot.lane.b32.xlu0 %v473, 96
    %v481 = vpop.permute.xlu0 %480
    %v484 = vmul.f32 %v474, %v479
    %v485 = vmul.f32 %v475, %v481
    %v486 = vrot.slane %v379, 7
    %v487 = vrot.slane %v380, 7
    %v490 = vmul.f32 %v438, %v486
    %v491 = vmul.f32 %v453, %v487
    %v492 = vadd.f32 %v484, %v490
    %v493 = vadd.f32 %v485, %v491
    %v496 = vrot.slane %v492, 2
    %v497 = vrot.slane %v493, 1
    %v498 = vsel %vm272, %v497, %v496
    %499 = vrot.lane.b32.xlu0 %v498, 96
    %v500 = vpop.permute.xlu0 %499
    %v501 = vsel %vm37, %v500, 0
    %503 = vmatpush.msra.mxu0 0.0
    %504 = vmatpush.msra.mxu0 0.0
    %505 = vmatpush.msra.mxu0 0.0
    %506 = vmatpush.msra.mxu0 0.0
    %507 = vmatpush.msra.mxu0 0.0
    %508 = vmatpush.msra.mxu0 0.0
    %509 = vmatpush.msra.mxu0 0.0
    %510 = vmatpush.msra.mxu0 0.0
    %511 = vmatpush.msra.mxu0 0.0
    %512 = vmatpush.msra.mxu0 0.0
    %513 = vmatpush.msra.mxu0 0.0
    %514 = vmatpush.msra.mxu0 0.0
    %515 = vmatpush.msra.mxu0 %v161
    %516 = vmatpush.msra.mxu0 %v160
    %517 = vmatpush.msra.mxu0 %v159
    %518 = vmatpush.msra.mxu0 %v158
    %519 = vmatmul.f32.gmra.mxu0 %v501
    %v520 = vpop.f32.mrf.mxu0
    %v521 = vadd.f32 %v164, %v520
    %522 = vdwg.mxu0
    %v524 = vrot.slane %v521, 5
    %v525 = vrot.slane %v521, 6
    %v528 = vadd.f32 %v153, %v524
    %v529 = vadd.f32 %v156, %v525
    %v530 = vxor.u32 %v528, 2147483648
    %v531 = vxor.u32 %v529, 2147483648
    %v532 = vmul.f32 %v530, 1.442695
    %v533 = vpow.pop %v532
    %v534 = vmul.f32 %v531, 1.442695
    %v535 = vpow.pop %v534
    %v536 = vadd.f32 %v533, 1.0
    %v537 = vadd.f32 %v535, 1.0
    %v538 = vrcp.pop %v536
    %v539 = vmul.f32 %v536, %v538
    %v540 = vsub.f32 1.0, %v539
    %v541 = vmul.f32 %v538, %v540
    %v542 = vadd.f32 %v538, %v541
    %vm543 = vweird.f32 %v536
    %vm544 = vweird.f32 %v538
    %vm545 = vmor %vm543, %vm544
    %v546 = vsel %vm545, %v538, %v542
    %v547 = vand.u32 2147483647, %v536
    %vm548 = vcmp.eq.f32.partialorder %v547, 8.507059e+37
    %v549 = vand.u32 %v536, 2147483648
    %v550 = vor.u32 1.1754944e-38, %v549
    %v551 = vsel %vm548, %v550, %v546
    %v552 = vmul.f32 1.0, %v551
    %v553 = vrcp.pop %v537
    %v554 = vmul.f32 %v537, %v553
    %v555 = vsub.f32 1.0, %v554
    %v556 = vmul.f32 %v553, %v555
    %v557 = vadd.f32 %v553, %v556
    %vm558 = vweird.f32 %v537
    %vm559 = vweird.f32 %v553
    %vm560 = vmor %vm558, %vm559
    %v561 = vsel %vm560, %v553, %v557
    %v562 = vand.u32 2147483647, %v537
    %vm563 = vcmp.eq.f32.partialorder %v562, 8.507059e+37
    %v564 = vand.u32 %v537, 2147483648
    %v565 = vor.u32 1.1754944e-38, %v564
    %v566 = vsel %vm563, %v565, %v561
    %v567 = vmul.f32 1.0, %v566
    %568 = vrot.lane.b32.xlu0 %v524, 64
    %v569 = vpop.permute.xlu0 %568
    %570 = vrot.lane.b32.xlu0 %v525, 64
    %v571 = vpop.permute.xlu0 %570
    %v574 = vmul.f32 %v552, %v569
    %v575 = vmul.f32 %v567, %v571
    %578 = vrot.lane.b32.xlu0 %v574, 64
    %v579 = vpop.permute.xlu0 %578
    %580 = vrot.lane.b32.xlu0 %v575, 64
    %v581 = vpop.permute.xlu0 %580
    %v584 = vadd.f32 %v153, %v579
    %v585 = vadd.f32 %v156, %v581
    %v586 = vtanh.pop %v584
    %v587 = vtanh.pop %v585
    %v588 = vsub.f32 1.0, %v552
    %v589 = vsub.f32 1.0, %v567
    %592 = vrot.lane.b32.xlu0 %v586, 96
    %v593 = vpop.permute.xlu0 %592
    %594 = vrot.lane.b32.xlu0 %v587, 96
    %v595 = vpop.permute.xlu0 %594
    %v598 = vmul.f32 %v588, %v593
    %v599 = vmul.f32 %v589, %v595
    %v600 = vrot.slane %v492, 7
    %v601 = vrot.slane %v493, 7
    %v604 = vmul.f32 %v552, %v600
    %v605 = vmul.f32 %v567, %v601
    %v606 = vadd.f32 %v598, %v604
    %v607 = vadd.f32 %v599, %v605
    %v610 = vrot.slane %v606, 3
    %v611 = vrot.slane %v607, 2
    %v612 = vsel %vm272, %v611, %v610
    %613 = vrot.lane.b32.xlu0 %v612, 96
    %v614 = vpop.permute.xlu0 %613
    %v615 = vsel %vm37, %v614, 0
    %617 = vmatpush.msra.mxu0 0.0
    %618 = vmatpush.msra.mxu0 0.0
    %619 = vmatpush.msra.mxu0 0.0
    %620 = vmatpush.msra.mxu0 0.0
    %621 = vmatpush.msra.mxu0 0.0
    %622 = vmatpush.msra.mxu0 0.0
    %623 = vmatpush.msra.mxu0 0.0
    %624 = vmatpush.msra.mxu0 0.0
    %625 = vmatpush.msra.mxu0 0.0
    %626 = vmatpush.msra.mxu0 0.0
    %627 = vmatpush.msra.mxu0 0.0
    %628 = vmatpush.msra.mxu0 0.0
    %629 = vmatpush.msra.mxu0 %v161
    %630 = vmatpush.msra.mxu0 %v160
    %631 = vmatpush.msra.mxu0 %v159
    %632 = vmatpush.msra.mxu0 %v158
    %633 = vmatmul.f32.gmra.mxu0 %v615
    %v634 = vpop.f32.mrf.mxu0
    %v635 = vadd.f32 %v164, %v634
    %636 = vdwg.mxu0
    %v638 = vrot.slane %v635, 4
    %v639 = vrot.slane %v635, 5
    %v642 = vadd.f32 %v153, %v638
    %v643 = vadd.f32 %v156, %v639
    %v644 = vxor.u32 %v642, 2147483648
    %v645 = vxor.u32 %v643, 2147483648
    %v646 = vmul.f32 %v644, 1.442695
    %v647 = vpow.pop %v646
    %v648 = vmul.f32 %v645, 1.442695
    %v649 = vpow.pop %v648
    %v650 = vadd.f32 %v647, 1.0
    %v651 = vadd.f32 %v649, 1.0
    %v652 = vrcp.pop %v650
    %v653 = vmul.f32 %v650, %v652
    %v654 = vsub.f32 1.0, %v653
    %v655 = vmul.f32 %v652, %v654
    %v656 = vadd.f32 %v652, %v655
    %vm657 = vweird.f32 %v650
    %vm658 = vweird.f32 %v652
    %vm659 = vmor %vm657, %vm658
    %v660 = vsel %vm659, %v652, %v656
    %v661 = vand.u32 2147483647, %v650
    %vm662 = vcmp.eq.f32.partialorder %v661, 8.507059e+37
    %v663 = vand.u32 %v650, 2147483648
    %v664 = vor.u32 1.1754944e-38, %v663
    %v665 = vsel %vm662, %v664, %v660
    %v666 = vmul.f32 1.0, %v665
    %v667 = vrcp.pop %v651
    %v668 = vmul.f32 %v651, %v667
    %v669 = vsub.f32 1.0, %v668
    %v670 = vmul.f32 %v667, %v669
    %v671 = vadd.f32 %v667, %v670
    %vm672 = vweird.f32 %v651
    %vm673 = vweird.f32 %v667
    %vm674 = vmor %vm672, %vm673
    %v675 = vsel %vm674, %v667, %v671
    %v676 = vand.u32 2147483647, %v651
    %vm677 = vcmp.eq.f32.partialorder %v676, 8.507059e+37
    %v678 = vand.u32 %v651, 2147483648
    %v679 = vor.u32 1.1754944e-38, %v678
    %v680 = vsel %vm677, %v679, %v675
    %v681 = vmul.f32 1.0, %v680
    %682 = vrot.lane.b32.xlu0 %v638, 64
    %v683 = vpop.permute.xlu0 %682
    %684 = vrot.lane.b32.xlu0 %v639, 64
    %v685 = vpop.permute.xlu0 %684
    %v688 = vmul.f32 %v666, %v683
    %v689 = vmul.f32 %v681, %v685
    %692 = vrot.lane.b32.xlu0 %v688, 64
    %v693 = vpop.permute.xlu0 %692
    %694 = vrot.lane.b32.xlu0 %v689, 64
    %v695 = vpop.permute.xlu0 %694
    %v698 = vadd.f32 %v153, %v693
    %v699 = vadd.f32 %v156, %v695
    %v700 = vtanh.pop %v698
    %v701 = vtanh.pop %v699
    %v702 = vsub.f32 1.0, %v666
    %v703 = vsub.f32 1.0, %v681
    %706 = vrot.lane.b32.xlu0 %v700, 96
    %v707 = vpop.permute.xlu0 %706
    %708 = vrot.lane.b32.xlu0 %v701, 96
    %v709 = vpop.permute.xlu0 %708
    %v712 = vmul.f32 %v702, %v707
    %v713 = vmul.f32 %v703, %v709
    %v714 = vrot.slane %v606, 7
    %v715 = vrot.slane %v607, 7
    %v718 = vmul.f32 %v666, %v714
    %v719 = vmul.f32 %v681, %v715
    %v720 = vadd.f32 %v712, %v718
    %v721 = vadd.f32 %v713, %v719
    %v724 = vrot.slane %v720, 4
    %v725 = vrot.slane %v721, 3
    %v726 = vsel %vm272, %v725, %v724
    %727 = vrot.lane.b32.xlu0 %v726, 96
    %v728 = vpop.permute.xlu0 %727
    %v729 = vsel %vm37, %v728, 0
    %731 = vmatpush.msra.mxu0 0.0
    %732 = vmatpush.msra.mxu0 0.0
    %733 = vmatpush.msra.mxu0 0.0
    %734 = vmatpush.msra.mxu0 0.0
    %735 = vmatpush.msra.mxu0 0.0
    %736 = vmatpush.msra.mxu0 0.0
    %737 = vmatpush.msra.mxu0 0.0
    %738 = vmatpush.msra.mxu0 0.0
    %739 = vmatpush.msra.mxu0 0.0
    %740 = vmatpush.msra.mxu0 0.0
    %741 = vmatpush.msra.mxu0 0.0
    %742 = vmatpush.msra.mxu0 0.0
    %743 = vmatpush.msra.mxu0 %v161
    %744 = vmatpush.msra.mxu0 %v160
    %745 = vmatpush.msra.mxu0 %v159
    %746 = vmatpush.msra.mxu0 %v158
    %747 = vmatmul.f32.gmra.mxu0 %v729
    %v748 = vpop.f32.mrf.mxu0
    %v749 = vadd.f32 %v164, %v748
    %750 = vdwg.mxu0
    %v752 = vrot.slane %v749, 3
    %v753 = vrot.slane %v749, 4
    %v756 = vadd.f32 %v153, %v752
    %v757 = vadd.f32 %v156, %v753
    %v758 = vxor.u32 %v756, 2147483648
    %v759 = vxor.u32 %v757, 2147483648
    %v760 = vmul.f32 %v758, 1.442695
    %v761 = vpow.pop %v760
    %v762 = vmul.f32 %v759, 1.442695
    %v763 = vpow.pop %v762
    %v764 = vadd.f32 %v761, 1.0
    %v765 = vadd.f32 %v763, 1.0
    %v766 = vrcp.pop %v764
    %v767 = vmul.f32 %v764, %v766
    %v768 = vsub.f32 1.0, %v767
    %v769 = vmul.f32 %v766, %v768
    %v770 = vadd.f32 %v766, %v769
    %vm771 = vweird.f32 %v764
    %vm772 = vweird.f32 %v766
    %vm773 = vmor %vm771, %vm772
    %v774 = vsel %vm773, %v766, %v770
    %v775 = vand.u32 2147483647, %v764
    %vm776 = vcmp.eq.f32.partialorder %v775, 8.507059e+37
    %v777 = vand.u32 %v764, 2147483648
    %v778 = vor.u32 1.1754944e-38, %v777
    %v779 = vsel %vm776, %v778, %v774
    %v780 = vmul.f32 1.0, %v779
    %v781 = vrcp.pop %v765
    %v782 = vmul.f32 %v765, %v781
    %v783 = vsub.f32 1.0, %v782
    %v784 = vmul.f32 %v781, %v783
    %v785 = vadd.f32 %v781, %v784
    %vm786 = vweird.f32 %v765
    %vm787 = vweird.f32 %v781
    %vm788 = vmor %vm786, %vm787
    %v789 = vsel %vm788, %v781, %v785
    %v790 = vand.u32 2147483647, %v765
    %vm791 = vcmp.eq.f32.partialorder %v790, 8.507059e+37
    %v792 = vand.u32 %v765, 2147483648
    %v793 = vor.u32 1.1754944e-38, %v792
    %v794 = vsel %vm791, %v793, %v789
    %v795 = vmul.f32 1.0, %v794
    %796 = vrot.lane.b32.xlu0 %v752, 64
    %v797 = vpop.permute.xlu0 %796
    %798 = vrot.lane.b32.xlu0 %v753, 64
    %v799 = vpop.permute.xlu0 %798
    %v802 = vmul.f32 %v780, %v797
    %v803 = vmul.f32 %v795, %v799
    %806 = vrot.lane.b32.xlu0 %v802, 64
    %v807 = vpop.permute.xlu0 %806
    %808 = vrot.lane.b32.xlu0 %v803, 64
    %v809 = vpop.permute.xlu0 %808
    %v812 = vadd.f32 %v153, %v807
    %v813 = vadd.f32 %v156, %v809
    %v814 = vtanh.pop %v812
    %v815 = vtanh.pop %v813
    %v816 = vsub.f32 1.0, %v780
    %v817 = vsub.f32 1.0, %v795
    %820 = vrot.lane.b32.xlu0 %v814, 96
    %v821 = vpop.permute.xlu0 %820
    %822 = vrot.lane.b32.xlu0 %v815, 96
    %v823 = vpop.permute.xlu0 %822
    %v826 = vmul.f32 %v816, %v821
    %v827 = vmul.f32 %v817, %v823
    %v828 = vrot.slane %v720, 7
    %v829 = vrot.slane %v721, 7
    %v832 = vmul.f32 %v780, %v828
    %v833 = vmul.f32 %v795, %v829
    %v834 = vadd.f32 %v826, %v832
    %v835 = vadd.f32 %v827, %v833
    %v838 = vrot.slane %v834, 5
    %v839 = vrot.slane %v835, 4
    %v840 = vsel %vm272, %v839, %v838
    %841 = vrot.lane.b32.xlu0 %v840, 96
    %v842 = vpop.permute.xlu0 %841
    %v843 = vsel %vm37, %v842, 0
    %845 = vmatpush.msra.mxu0 0.0
    %846 = vmatpush.msra.mxu0 0.0
    %847 = vmatpush.msra.mxu0 0.0
    %848 = vmatpush.msra.mxu0 0.0
    %849 = vmatpush.msra.mxu0 0.0
    %850 = vmatpush.msra.mxu0 0.0
    %851 = vmatpush.msra.mxu0 0.0
    %852 = vmatpush.msra.mxu0 0.0
    %853 = vmatpush.msra.mxu0 0.0
    %854 = vmatpush.msra.mxu0 0.0
    %855 = vmatpush.msra.mxu0 0.0
    %856 = vmatpush.msra.mxu0 0.0
    %857 = vmatpush.msra.mxu0 %v161
    %858 = vmatpush.msra.mxu0 %v160
    %859 = vmatpush.msra.mxu0 %v159
    %860 = vmatpush.msra.mxu0 %v158
    %861 = vmatmul.f32.gmra.mxu0 %v843
    %v862 = vpop.f32.mrf.mxu0
    %v863 = vadd.f32 %v164, %v862
    %864 = vdwg.mxu0
    %v866 = vrot.slane %v863, 2
    %v867 = vrot.slane %v863, 3
    %v870 = vadd.f32 %v153, %v866
    %v871 = vadd.f32 %v156, %v867
    %v872 = vxor.u32 %v870, 2147483648
    %v873 = vxor.u32 %v871, 2147483648
    %v874 = vmul.f32 %v872, 1.442695
    %v875 = vpow.pop %v874
    %v876 = vmul.f32 %v873, 1.442695
    %v877 = vpow.pop %v876
    %v878 = vadd.f32 %v875, 1.0
    %v879 = vadd.f32 %v877, 1.0
    %v880 = vrcp.pop %v878
    %v881 = vmul.f32 %v878, %v880
    %v882 = vsub.f32 1.0, %v881
    %v883 = vmul.f32 %v880, %v882
    %v884 = vadd.f32 %v880, %v883
    %vm885 = vweird.f32 %v878
    %vm886 = vweird.f32 %v880
    %vm887 = vmor %vm885, %vm886
    %v888 = vsel %vm887, %v880, %v884
    %v889 = vand.u32 2147483647, %v878
    %vm890 = vcmp.eq.f32.partialorder %v889, 8.507059e+37
    %v891 = vand.u32 %v878, 2147483648
    %v892 = vor.u32 1.1754944e-38, %v891
    %v893 = vsel %vm890, %v892, %v888
    %v894 = vmul.f32 1.0, %v893
    %v895 = vrcp.pop %v879
    %v896 = vmul.f32 %v879, %v895
    %v897 = vsub.f32 1.0, %v896
    %v898 = vmul.f32 %v895, %v897
    %v899 = vadd.f32 %v895, %v898
    %vm900 = vweird.f32 %v879
    %vm901 = vweird.f32 %v895
    %vm902 = vmor %vm900, %vm901
    %v903 = vsel %vm902, %v895, %v899
    %v904 = vand.u32 2147483647, %v879
    %vm905 = vcmp.eq.f32.partialorder %v904, 8.507059e+37
    %v906 = vand.u32 %v879, 2147483648
    %v907 = vor.u32 1.1754944e-38, %v906
    %v908 = vsel %vm905, %v907, %v903
    %v909 = vmul.f32 1.0, %v908
    %910 = vrot.lane.b32.xlu0 %v866, 64
    %v911 = vpop.permute.xlu0 %910
    %912 = vrot.lane.b32.xlu0 %v867, 64
    %v913 = vpop.permute.xlu0 %912
    %v916 = vmul.f32 %v894, %v911
    %v917 = vmul.f32 %v909, %v913
    %920 = vrot.lane.b32.xlu0 %v916, 64
    %v921 = vpop.permute.xlu0 %920
    %922 = vrot.lane.b32.xlu0 %v917, 64
    %v923 = vpop.permute.xlu0 %922
    %v926 = vadd.f32 %v153, %v921
    %v927 = vadd.f32 %v156, %v923
    %v928 = vtanh.pop %v926
    %v929 = vtanh.pop %v927
    %v930 = vsub.f32 1.0, %v894
    %v931 = vsub.f32 1.0, %v909
    %934 = vrot.lane.b32.xlu0 %v928, 96
    %v935 = vpop.permute.xlu0 %934
    %936 = vrot.lane.b32.xlu0 %v929, 96
    %v937 = vpop.permute.xlu0 %936
    %v940 = vmul.f32 %v930, %v935
    %v941 = vmul.f32 %v931, %v937
    %v942 = vrot.slane %v834, 7
    %v943 = vrot.slane %v835, 7
    %v946 = vmul.f32 %v894, %v942
    %v947 = vmul.f32 %v909, %v943
    %v948 = vadd.f32 %v940, %v946
    %v949 = vadd.f32 %v941, %v947
    %v952 = vrot.slane %v948, 6
    %v953 = vrot.slane %v949, 5
    %v954 = vsel %vm272, %v953, %v952
    %955 = vrot.lane.b32.xlu0 %v954, 96
    %v956 = vpop.permute.xlu0 %955
    %v957 = vsel %vm37, %v956, 0
    %959 = vmatpush.msra.mxu0 0.0
    %960 = vmatpush.msra.mxu0 0.0
    %961 = vmatpush.msra.mxu0 0.0
    %962 = vmatpush.msra.mxu0 0.0
    %963 = vmatpush.msra.mxu0 0.0
    %964 = vmatpush.msra.mxu0 0.0
    %965 = vmatpush.msra.mxu0 0.0
    %966 = vmatpush.msra.mxu0 0.0
    %967 = vmatpush.msra.mxu0 0.0
    %968 = vmatpush.msra.mxu0 0.0
    %969 = vmatpush.msra.mxu0 0.0
    %970 = vmatpush.msra.mxu0 0.0
    %971 = vmatpush.msra.mxu0 %v161
    %972 = vmatpush.msra.mxu0 %v160
    %973 = vmatpush.msra.mxu0 %v159
    %974 = vmatpush.msra.mxu0 %v158
    %975 = vmatmul.f32.gmra.mxu0 %v957
    %v976 = vpop.f32.mrf.mxu0
    %v977 = vadd.f32 %v164, %v976
    %978 = vdwg.mxu0
    %v980 = vrot.slane %v977, 1
    %v981 = vrot.slane %v977, 2
    %v984 = vadd.f32 %v153, %v980
    %v985 = vadd.f32 %v156, %v981
    %v986 = vxor.u32 %v984, 2147483648
    %v987 = vxor.u32 %v985, 2147483648
    %v988 = vmul.f32 %v986, 1.442695
    %v989 = vpow.pop %v988
    %v990 = vmul.f32 %v987, 1.442695
    %v991 = vpow.pop %v990
    %v992 = vadd.f32 %v989, 1.0
    %v993 = vadd.f32 %v991, 1.0
    %v994 = vrcp.pop %v992
    %v995 = vmul.f32 %v992, %v994
    %v996 = vsub.f32 1.0, %v995
    %v997 = vmul.f32 %v994, %v996
    %v998 = vadd.f32 %v994, %v997
    %vm999 = vweird.f32 %v992
    %vm1000 = vweird.f32 %v994
    %vm1001 = vmor %vm999, %vm1000
    %v1002 = vsel %vm1001, %v994, %v998
    %v1003 = vand.u32 2147483647, %v992
    %vm1004 = vcmp.eq.f32.partialorder %v1003, 8.507059e+37
    %v1005 = vand.u32 %v992, 2147483648
    %v1006 = vor.u32 1.1754944e-38, %v1005
    %v1007 = vsel %vm1004, %v1006, %v1002
    %v1008 = vmul.f32 1.0, %v1007
    %v1009 = vrcp.pop %v993
    %v1010 = vmul.f32 %v993, %v1009
    %v1011 = vsub.f32 1.0, %v1010
    %v1012 = vmul.f32 %v1009, %v1011
    %v1013 = vadd.f32 %v1009, %v1012
    %vm1014 = vweird.f32 %v993
    %vm1015 = vweird.f32 %v1009
    %vm1016 = vmor %vm1014, %vm1015
    %v1017 = vsel %vm1016, %v1009, %v1013
    %v1018 = vand.u32 2147483647, %v993
    %vm1019 = vcmp.eq.f32.partialorder %v1018, 8.507059e+37
    %v1020 = vand.u32 %v993, 2147483648
    %v1021 = vor.u32 1.1754944e-38, %v1020
    %v1022 = vsel %vm1019, %v1021, %v1017
    %v1023 = vmul.f32 1.0, %v1022
    %1024 = vrot.lane.b32.xlu0 %v980, 64
    %v1025 = vpop.permute.xlu0 %1024
    %1026 = vrot.lane.b32.xlu0 %v981, 64
    %v1027 = vpop.permute.xlu0 %1026
    %v1030 = vmul.f32 %v1008, %v1025
    %v1031 = vmul.f32 %v1023, %v1027
    %1034 = vrot.lane.b32.xlu0 %v1030, 64
    %v1035 = vpop.permute.xlu0 %1034
    %1036 = vrot.lane.b32.xlu0 %v1031, 64
    %v1037 = vpop.permute.xlu0 %1036
    %v1040 = vadd.f32 %v153, %v1035
    %v1041 = vadd.f32 %v156, %v1037
    %v1042 = vtanh.pop %v1040
    %v1043 = vtanh.pop %v1041
    %v1044 = vsub.f32 1.0, %v1008
    %v1045 = vsub.f32 1.0, %v1023
    %1048 = vrot.lane.b32.xlu0 %v1042, 96
    %v1049 = vpop.permute.xlu0 %1048
    %1050 = vrot.lane.b32.xlu0 %v1043, 96
    %v1051 = vpop.permute.xlu0 %1050
    %v1054 = vmul.f32 %v1044, %v1049
    %v1055 = vmul.f32 %v1045, %v1051
    %v1056 = vrot.slane %v948, 7
    %v1057 = vrot.slane %v949, 7
    %v1060 = vmul.f32 %v1008, %v1056
    %v1061 = vmul.f32 %v1023, %v1057
    %v1062 = vadd.f32 %v1054, %v1060
    %v1063 = vadd.f32 %v1055, %v1061
    %1066 = vrot.lane.b32.xlu0 %v498, 32
    %v1067 = vpop.permute.xlu0 %1066
    %1069 = vrot.lane.b32.xlu0 %v612, 64
    %v1070 = vpop.permute.xlu0 %1069
    %1074 = vrot.lane.b32.xlu0 %v954, 32
    %v1075 = vpop.permute.xlu0 %1074
    %v1079 = vrot.slane %v1062, 7
    %v1080 = vrot.slane %v1063, 6
    %v1081 = vsel %vm272, %v1080, %v1079
    %1082 = vrot.lane.b32.xlu0 %v1081, 64
    %v1083 = vpop.permute.xlu0 %1082
    %v1085 = vsel %vm37, %v275, %v384
    %vm1086 = vcmask 523264
    %v1087 = vsel %vm1086, %v1085, %v1067
    %vm1088 = vcmask 785408
    %v1089 = vsel %vm1088, %v1087, %v1070
    %v1090 = vsel %vm37, %v728, %v840
    %v1091 = vsel %vm1086, %v1090, %v1075
    %v1092 = vsel %vm1088, %v1091, %v1083
    %v1095 = vrot.slane %v1092, 6
    %v1096 = vsel %vm131, %v1089, %v1095
    %1098 = vst [vmem:[%s6] sm:$0xf] %v1096
    %v1099 = vrot.slane %v1063, 7
    %1100 = vrot.lane.b32.xlu0 %v1062, 96
    %v1101 = vpop.permute.xlu0 %1100
    %1102 = vrot.lane.b32.xlu0 %v1099, 96
    %v1103 = vpop.permute.xlu0 %1102
    %vm1106 = vcmask 261127
    %1107 = vst.msk [vmem:[#allocation2 - $0x7] sm:$0x80] %vm1106, %v1101
    %vm1108 = vcmask 253952
    %1109 = vst.msk [vmem:[#allocation2 + $0x1] sm:$0x1] %vm1108, %v1103
    // Predicated region
    $region26: #{encoder_forward.1} parent=1 // pred_check
      _
    $region27: #{encoder_forward.1} parent=1 // pred_check_branch
      %1111 = sbr.rel (0) target = $region29
    $region28: #{encoder_forward.1} parent=1 // pred_region
      _
    $region29: #{encoder_forward.1} parent=1 // pred_fallthru
      _
    // Predicated region
    $region30: #{encoder_forward.1} parent=1 // pred_check
      _
    $region31: #{encoder_forward.1} parent=1 // pred_check_branch
      %1113 = sbr.rel (0) target = $region33
    $region32: #{encoder_forward.1} parent=1 // pred_region
      %1115 = vsyncadd [#allocation3], 0
      %s1117 = sshll.u32 [#allocation2], 4
      %s1118 = int_to_ptr.vmem [resolvable:$true] %s1117
      %s1119 = sshll.u32 %s7, 4
      %s1120 = int_to_ptr.hbm [resolvable:$true] %s1119
      %1122 = dma.vmem_to_hbm [thread:$0]  %s1118, 32, %s1120, [#allocation3]
    $region33: #{encoder_forward.1} parent=1 // pred_fallthru
      _
    // Predicated region
    $region34: #{encoder_forward.1} parent=1 // pred_check
      _
    $region35: #{encoder_forward.1} parent=1 // pred_check_branch
      %1124 = sbr.rel (0) target = $region37
    $region36: #{encoder_forward.1} parent=1 // pred_region
      _
    $region37: #{encoder_forward.1} parent=1 // pred_fallthru
      _
    // Predicated region
    $region38: #{encoder_forward.1} parent=1 // pred_check
      _
    $region39: #{encoder_forward.1} parent=1 // pred_check_branch
      %1126 = sbr.rel (0) target = $region41
    $region40: #{encoder_forward.1} parent=1 // pred_region
      %1128 = dma.done [#allocation3], 32
    $region41: #{encoder_forward.1} parent=1 // pred_fallthru
      _
    %1129 = vsyncpa [#allocation3], 1

</llo_original>
